<compile_context>
chip_gen: v6e
topology: v6e:2x2x1
jax: 0.10.0
libtpu: 0.0.40
codegen_flags: <defaults>
</compile_context>

<pallas_src>
import functools

import jax
import jax.numpy as jnp
from jax.experimental import pallas as pl
from jax.experimental.pallas import tpu as pltpu


def _label_smooth_kernel(x_ref, t_ref, out_ref, *, smoothing, n_valid):
    x = x_ref[...].astype(jnp.float32)          # (tile_rows, C) logical shape
    t = t_ref[...]                               # (tile_rows, 1) int32
    tile_rows, c = x.shape

    # log-softmax pieces (reductions over the logical C extent; Mosaic masks
    # the internal lane padding for non-128-aligned C automatically).
    m = jnp.max(x, axis=-1, keepdims=True)
    z = x - m
    exp_sum = jnp.sum(jnp.exp(z), axis=-1, keepdims=True)
    z_sum = jnp.sum(z, axis=-1, keepdims=True)

    # z at the target class (scatter_ equivalent via iota compare + select).
    col = jax.lax.broadcasted_iota(jnp.int32, z.shape, 1)
    z_t = jnp.sum(jnp.where(col == t, z, 0.0), axis=-1, keepdims=True)

    lse = jnp.log(exp_sum)                       # (tile_rows, 1)
    off = jnp.float32(smoothing / (c - 1.0))
    on = jnp.float32(1.0 - smoothing)
    # row_loss = sum_c -w_c*(z_c - lse) = lse*sum(w) - sum(w_c*z_c)
    #          = lse - off*z_sum - (on - off)*z_t      (sum(w) == 1 exactly)
    row_loss = lse - off * z_sum - (on - off) * z_t   # (tile_rows, 1)

    # Mask tail rows of the last (partial) block.  Static branch: only emitted
    # when N is not a multiple of tile_rows.
    if n_valid % tile_rows != 0:
        row = (pl.program_id(0) * tile_rows
               + jax.lax.broadcasted_iota(jnp.int32, (tile_rows, 1), 0))
        row_loss = jnp.where(row < n_valid, row_loss, 0.0)

    # One partial sum per grid step (single tiny store, lane-dense reduction
    # done on-chip; final mean happens outside over num_blocks scalars).
    out_ref[...] = jnp.sum(row_loss, axis=0, keepdims=True).reshape(1, 1, 1)


def label_smooth_loss(x, target, smoothing=0.0, *,
                      block_bytes_budget=4 * 1024 * 1024,
                      min_grid_steps=4):
    """x: [N, C] float (f32 or bf16), target: [N] int.  Returns scalar f32."""
    n, c = x.shape
    assert c > 1, "LabelSmoothLoss needs at least 2 classes (divides by C-1)."

    itemsize = jnp.dtype(x.dtype).itemsize
    pack = 16 if x.dtype == jnp.dtype(jnp.bfloat16) else 8
    c_lanes = ((c + 127) // 128) * 128            # VMEM lane footprint only
    row_bytes = c_lanes * itemsize                #   (no HBM padding!)

    n_ceil = ((n + pack - 1) // pack) * pack
    # Largest tile under the byte budget, aligned to the sublane pack.
    budget_rows = max(pack, (block_bytes_budget // row_bytes) // pack * pack)
    # Keep >= min_grid_steps grid steps when N allows (v7x has 2 TensorCores;
    # a 1-step "parallel" grid leaves one idle).
    target_rows = max(pack, ((pl.cdiv(n, min_grid_steps) + pack - 1) // pack) * pack)
    tile_rows = min(budget_rows, target_rows, n_ceil)

    num_blocks = pl.cdiv(n, tile_rows)
    t2d = target.astype(jnp.int32).reshape(n, 1)

    # Explicit VMEM budget: double-buffered input block + ~3 f32 temp blocks
    # (bf16 inputs are cast to f32 in-kernel) + headroom; keep well under the
    # 64 MiB physical VMEM of v7x.
    in_block = tile_rows * row_bytes
    f32_block = tile_rows * c_lanes * 4
    vmem_limit = 2 * in_block + 3 * f32_block + (4 << 20)
    vmem_limit = int(min(56 * 1024 * 1024, max(16 * 1024 * 1024, vmem_limit)))

    kernel = functools.partial(
        _label_smooth_kernel, smoothing=float(smoothing), n_valid=n)

    partial = pl.pallas_call(
        kernel,
        out_shape=jax.ShapeDtypeStruct((num_blocks, 1, 1), jnp.float32),
        grid_spec=pltpu.PrefetchScalarGridSpec(
            num_scalar_prefetch=0,
            grid=(num_blocks,),
            in_specs=[
                # Full-C last dim (== array dim, so exempt from 128 rule).
                pl.BlockSpec((tile_rows, c), lambda i: (i, 0)),
                pl.BlockSpec((tile_rows, 1), lambda i: (i, 0)),
            ],
            out_specs=pl.BlockSpec((1, 1, 1), lambda i: (i, 0, 0)),
        ),
        compiler_params=pltpu.CompilerParams(
            dimension_semantics=("parallel",),
            vmem_limit_bytes=vmem_limit),
    )(x, t2d)

    return jnp.sum(partial) / jnp.float32(n)


def _reference(x, target, smoothing):
    log_prob = jax.nn.log_softmax(x.astype(jnp.float32), axis=-1)
    c = x.shape[-1]
    weight = jnp.full(x.shape, smoothing / (c - 1.0), dtype=jnp.float32)
    onehot = jax.nn.one_hot(target, c, dtype=jnp.float32)
    weight = weight * (1.0 - onehot) + onehot * (1.0 - smoothing)
    return jnp.mean(jnp.sum(-weight * log_prob, axis=-1))


if __name__ == "__main__":
    key = jax.random.PRNGKey(0)
    smoothing = 0.1

    # Case 1: small shape, C < 128 (non-lane-aligned class axis, even N).
    k1, k2, k3, k4 = jax.random.split(key, 4)
    N, C = 16, 32
    x = jax.random.normal(k1, (N, C), dtype=jnp.float32)
    target = jax.random.randint(k2, (N,), 0, C, dtype=jnp.int32)
    loss = label_smooth_loss(x, target, smoothing=smoothing)
    jax.block_until_ready(loss)
    ref = _reference(x, target, smoothing)
    assert jnp.allclose(loss, ref, rtol=1e-5, atol=1e-4), (loss, ref)

    # Case 2: non-aligned N and C (exercises the in-kernel tail-row mask and
    # the non-128-aligned class reduction — no wrapper padding anywhere).
    N2, C2 = 50, 200
    x2 = jax.random.normal(k3, (N2, C2), dtype=jnp.float32)
    target2 = jax.random.randint(k4, (N2,), 0, C2, dtype=jnp.int32)
    loss2 = label_smooth_loss(x2, target2, smoothing=smoothing)
    jax.block_until_ready(loss2)
    ref2 = _reference(x2, target2, smoothing)
    assert jnp.allclose(loss2, ref2, rtol=1e-5, atol=1e-4), (loss2, ref2)

    print("KERNEL_OK")
</pallas_src>

<mosaic_0001>
module attributes {stable_mosaic.version = 11 : i64} {
  func.func @_label_smooth_kernel(%arg0: i32, %arg1: memref<8x32xf32, #tpu.memory_space<vmem>>, %arg2: memref<8x1xi32, #tpu.memory_space<vmem>>, %arg3: memref<1x1x1xf32, #tpu.memory_space<vmem>>) attributes {dimension_semantics = [#tpu.dimension_semantics<parallel>], iteration_bounds = array<i64: 2>, scalar_prefetch = 0 : i64, scratch_operands = 0 : i64, tpu.core_type = #tpu.core_type<tc>, window_params = [{transform_indices = @transform_0, window_bounds = array<i64: 8, 32>}, {transform_indices = @transform_1, window_bounds = array<i64: 8, 1>}, {transform_indices = @transform_2, window_bounds = array<i64: 1, 1, 1>}]} {
    %c0 = arith.constant 0 : index
    %c0_0 = arith.constant 0 : index
    %0 = vector.load %arg1[%c0, %c0_0] : memref<8x32xf32, #tpu.memory_space<vmem>>, vector<8x32xf32>
    %c0_1 = arith.constant 0 : index
    %c0_2 = arith.constant 0 : index
    %1 = vector.load %arg2[%c0_1, %c0_2] : memref<8x1xi32, #tpu.memory_space<vmem>>, vector<8x1xi32>
    %cst = arith.constant dense<0xFF800000> : vector<8xf32>
    %2 = vector.multi_reduction <maximumf>, %0, %cst [1] : vector<8x32xf32> to vector<8xf32>
    %3 = vector.shape_cast %2 : vector<8xf32> to vector<8x1xf32>
    %4 = vector.broadcast %3 : vector<8x1xf32> to vector<8x32xf32>
    %5 = arith.subf %0, %4 : vector<8x32xf32>
    %6 = math.exp %5 : vector<8x32xf32>
    %cst_3 = arith.constant dense<0.000000e+00> : vector<8xf32>
    %7 = vector.multi_reduction <add>, %6, %cst_3 [1] : vector<8x32xf32> to vector<8xf32>
    %8 = vector.shape_cast %7 : vector<8xf32> to vector<8x1xf32>
    %cst_4 = arith.constant dense<0.000000e+00> : vector<8xf32>
    %9 = vector.multi_reduction <add>, %5, %cst_4 [1] : vector<8x32xf32> to vector<8xf32>
    %10 = vector.shape_cast %9 : vector<8xf32> to vector<8x1xf32>
    %11 = tpu.iota {dimensions = array<i32: 1>} : vector<8x32xi32>
    %12 = vector.broadcast %1 : vector<8x1xi32> to vector<8x32xi32>
    %13 = arith.cmpi eq, %11, %12 : vector<8x32xi32>
    %cst_5 = arith.constant 0.000000e+00 : f32
    %14 = vector.broadcast %cst_5 : f32 to vector<8x32xf32>
    %15 = arith.select %13, %5, %14 : vector<8x32xi1>, vector<8x32xf32>
    %cst_6 = arith.constant dense<0.000000e+00> : vector<8xf32>
    %16 = vector.multi_reduction <add>, %15, %cst_6 [1] : vector<8x32xf32> to vector<8xf32>
    %17 = vector.shape_cast %16 : vector<8xf32> to vector<8x1xf32>
    %18 = math.log %8 : vector<8x1xf32>
    %cst_7 = arith.constant 0.0032258064 : f32
    %19 = vector.broadcast %cst_7 : f32 to vector<8x1xf32>
    %20 = arith.mulf %19, %10 : vector<8x1xf32>
    %21 = arith.subf %18, %20 : vector<8x1xf32>
    %cst_8 = arith.constant 0.899999976 : f32
    %cst_9 = arith.constant 0.0032258064 : f32
    %22 = arith.subf %cst_8, %cst_9 : f32
    %23 = vector.broadcast %22 : f32 to vector<8x1xf32>
    %24 = arith.mulf %23, %17 : vector<8x1xf32>
    %25 = arith.subf %21, %24 : vector<8x1xf32>
    %cst_10 = arith.constant dense<0.000000e+00> : vector<1xf32>
    %26 = vector.multi_reduction <add>, %25, %cst_10 [0] : vector<8x1xf32> to vector<1xf32>
    %27 = vector.shape_cast %26 : vector<1xf32> to vector<1x1xf32>
    %28 = vector.shape_cast %27 : vector<1x1xf32> to vector<1x1x1xf32>
    %c0_11 = arith.constant 0 : index
    %c0_12 = arith.constant 0 : index
    %c0_13 = arith.constant 0 : index
    %29 = vector.load %arg3[%c0_11, %c0_12, %c0_13] : memref<1x1x1xf32, #tpu.memory_space<vmem>>, vector<1x1x1xf32>
    tpu.vector_store %arg3[%c0_11, %c0_12, %c0_13], %28 {strides = array<i32>} : memref<1x1x1xf32, #tpu.memory_space<vmem>>, vector<1x1x1xf32>,
    return
  }
  func.func @transform_0(%arg0: i32) -> (i32, i32) {
    %c0_i32 = arith.constant 0 : i32
    %c0_i32_0 = arith.constant 0 : i32
    return %arg0, %c0_i32 : i32, i32
  }
  func.func @transform_1(%arg0: i32) -> (i32, i32) {
    %c0_i32 = arith.constant 0 : i32
    %c0_i32_0 = arith.constant 0 : i32
    return %arg0, %c0_i32 : i32, i32
  }
  func.func @transform_2(%arg0: i32) -> (i32, i32, i32) {
    %c0_i32 = arith.constant 0 : i32
    %c0_i32_0 = arith.constant 0 : i32
    %c0_i32_1 = arith.constant 0 : i32
    return %arg0, %c0_i32, %c0_i32_0 : i32, i32, i32
  }
}

</mosaic_0001>

<llo_original>
// kernel: tpu_custom_call.1
$region0: #{tpu_custom_call.1}
  #allocation0 [shape = 'u32[]', space=smem, size = 0x4, offset = 0x4, fixed_abs, tag = 'smem constant byte address 0x4 - core index']
  #allocation1 [shape = 'u32[144,128]{1,0:T(1,128)}', space=vmem, size = 0x12000, scoped, tag = 'internal scratch']
  %s0 = inlined_call_operand.vmem [shape: f32[16,32], index: 0, kind: input, shape index: {}]
  %s1 = inlined_call_operand.vmem [shape: s32[16,1], index: 1, kind: input, shape index: {}]
  %s2 = inlined_call_operand.vmem [shape: f32[2,1,1], index: 2, kind: output, shape index: {}]
  %s3 = sld [smem:[#allocation0]]
  $region41: #{tpu_custom_call.1} parent=0
    _
  %s5 = ssub.s32 1, %s3
  %s6 = scalar_select 0, %s5, %s3
  loop: start=0, step=1, limit=4
  $region2: #{tpu_custom_call.1} parent=0 // loop_pre_header
    _
  $region3: #{tpu_custom_call.1} parent=0 // loop_header
    %s8 = sphi 0, %s12
    %p9 = scmp.ge.s32.totalorder %s8, 4
    %s18 = sphi 0, %s20
    %s21 = sphi 0, %s18
    %s22 = sphi 0, %s21
    %s38 = sphi 0, %s22
    %s44 = sphi 0, %s46
    %s47 = sphi 0, %s44
    %s48 = sphi 0, %s47
    %s64 = sphi 0, %s48
    %s70 = sphi 0, %s72
    %s73 = sphi 0, %s70
    %s74 = sphi 0, %s73
    %s90 = sphi 0, %s74
  $region4: #{tpu_custom_call.1} parent=0 // loop_header_branch
    %11 = sbr.rel (%p9) target = $region8
  $region5: #{tpu_custom_call.1} parent=0 // loop_body
    %s13 = ssub.s32 %s8, 1
    %s14 = ssub.s32 %s8, 2
    %s15 = sadd.s32 %s8, 1
    %s16 = ssub.s32 %s8, %s15
    %p17 = scmp.eq.s32.totalorder %s16, 0
    %s19 = sadd.s32 %s18, 1
    %s20 = scalar_select %p17, %s18, %s19
    %p23 = pneg %p17
    %p24 = scmp.eq.s32.totalorder %s8, 1
    %p25 = por %p23, %p24
    %p26 = scmp.ne.s32.totalorder %s18, %s21
    %p27 = scmp.eq.s32.totalorder %s8, 0
    %p28 = por %p26, %p27
    %p29 = scmp.ne.s32.totalorder %s18, %s21
    %p30 = scmp.eq.s32.totalorder %s13, 1
    %p31 = por %p29, %p30
    %p32 = scmp.ne.s32.totalorder %s21, %s22
    %p33 = scmp.eq.s32.totalorder %s13, 0
    %p34 = por %p32, %p33
    %p35 = scmp.ne.s32.totalorder %s21, %s22
    %p36 = scmp.eq.s32.totalorder %s14, 1
    %p37 = por %p35, %p36
    %p39 = scmp.ne.s32.totalorder %s22, %s38
    %p40 = scmp.eq.s32.totalorder %s14, 0
    %p41 = por %p39, %p40
    %s42 = ssub.s32 %s8, %s15
    %p43 = scmp.eq.s32.totalorder %s42, 0
    %s45 = sadd.s32 %s44, 1
    %s46 = scalar_select %p43, %s44, %s45
    %p49 = pneg %p43
    %p50 = scmp.eq.s32.totalorder %s8, 1
    %p51 = por %p49, %p50
    %p52 = scmp.ne.s32.totalorder %s44, %s47
    %p53 = scmp.eq.s32.totalorder %s8, 0
    %p54 = por %p52, %p53
    %p55 = scmp.ne.s32.totalorder %s44, %s47
    %p56 = scmp.eq.s32.totalorder %s13, 1
    %p57 = por %p55, %p56
    %p58 = scmp.ne.s32.totalorder %s47, %s48
    %p59 = scmp.eq.s32.totalorder %s13, 0
    %p60 = por %p58, %p59
    %p61 = scmp.ne.s32.totalorder %s47, %s48
    %p62 = scmp.eq.s32.totalorder %s14, 1
    %p63 = por %p61, %p62
    %p65 = scmp.ne.s32.totalorder %s48, %s64
    %p66 = scmp.eq.s32.totalorder %s14, 0
    %p67 = por %p65, %p66
    %s68 = ssub.s32 %s8, %s15
    %p69 = scmp.eq.s32.totalorder %s68, 0
    %s71 = sadd.s32 %s70, 1
    %s72 = scalar_select %p69, %s70, %s71
    %p75 = pneg %p69
    %p76 = scmp.eq.s32.totalorder %s8, 1
    %p77 = por %p75, %p76
    %p78 = scmp.ne.s32.totalorder %s70, %s73
    %p79 = scmp.eq.s32.totalorder %s8, 0
    %p80 = por %p78, %p79
    %p81 = scmp.ne.s32.totalorder %s70, %s73
    %p82 = scmp.eq.s32.totalorder %s13, 1
    %p83 = por %p81, %p82
    %p84 = scmp.ne.s32.totalorder %s73, %s74
    %p85 = scmp.eq.s32.totalorder %s13, 0
    %p86 = por %p84, %p85
    %p87 = scmp.ne.s32.totalorder %s73, %s74
    %p88 = scmp.eq.s32.totalorder %s14, 1
    %p89 = por %p87, %p88
    %p91 = scmp.ne.s32.totalorder %s74, %s90
    %p92 = scmp.eq.s32.totalorder %s14, 0
    %p93 = por %p91, %p92
    %p94 = scmp.le.s32.totalorder 1, %s8
    %p95 = scmp.lt.s32.totalorder %s8, 3
    %p96 = pnand %p94, %p95
    %p97 = pneg %p96
    // Predicated region
    $region9: #{tpu_custom_call.1} parent=5 // pred_check
      _
    $region10: #{tpu_custom_call.1} parent=5 // pred_check_branch
      %99 = sbr.rel (%p96) target = $region12
    $region11: #{tpu_custom_call.1} parent=5 // pred_region
      %s100 = ssub.s32 %s8, 1
    $region12: #{tpu_custom_call.1} parent=5 // pred_fallthru
      _
    %p101 = scmp.lt.s32.totalorder %s8, 2
    // Predicated region
    $region13: #{tpu_custom_call.1} parent=5 // pred_check
      %p102 = pneg %p101
    $region14: #{tpu_custom_call.1} parent=5 // pred_check_branch
      %104 = sbr.rel (%p102) target = $region16
    $region15: #{tpu_custom_call.1} parent=5 // pred_region
      // Predicated region
      $region17: #{tpu_custom_call.1} parent=15 // pred_check
        %p105 = pneg %p28
      $region18: #{tpu_custom_call.1} parent=15 // pred_check_branch
        %107 = sbr.rel (%p105) target = $region20
      $region19: #{tpu_custom_call.1} parent=15 // pred_region
        %p108 = scmp.lt.s32.totalorder %s8, 1
        %s109 = scalar_select %p108, %s8, 1
        %s110 = smul.addr %s109, 8
        %s111 = scalar_lea.vmem %s0, %s110
      $region20: #{tpu_custom_call.1} parent=15 // pred_fallthru
        _
      // Predicated region
      $region21: #{tpu_custom_call.1} parent=15 // pred_check
        %p112 = pneg %p54
      $region22: #{tpu_custom_call.1} parent=15 // pred_check_branch
        %114 = sbr.rel (%p112) target = $region24
      $region23: #{tpu_custom_call.1} parent=15 // pred_region
        %p115 = scmp.lt.s32.totalorder %s8, 1
        %s116 = scalar_select %p115, %s8, 1
        %s117 = smul.addr %s116, 8
        %s118 = scalar_lea.vmem %s1, %s117
      $region24: #{tpu_custom_call.1} parent=15 // pred_fallthru
        _
    $region16: #{tpu_custom_call.1} parent=5 // pred_fallthru
      _
    %p119 = scmp.le.s32.totalorder 1, %s8
    %p120 = scmp.lt.s32.totalorder %s8, 3
    %p121 = pnand %p119, %p120
    %p122 = pneg %p121
    // Predicated region
    $region25: #{tpu_custom_call.1} parent=5 // pred_check
      _
    $region26: #{tpu_custom_call.1} parent=5 // pred_check_branch
      %124 = sbr.rel (%p121) target = $region28
    $region27: #{tpu_custom_call.1} parent=5 // pred_region
      %s125 = ssub.s32 %s8, 1
      %p126 = scmp.lt.s32.totalorder %s13, 1
      %s127 = scalar_select %p126, %s13, 1
      %s128 = smul.addr %s127, 8
      %s129 = scalar_lea.vmem %s0, %s128
      %p130 = pneg %p34
      %p131 = pneg %p31
      %p132 = scmp.lt.s32.totalorder %s13, 1
      %s133 = scalar_select %p132, %s13, 1
      %s134 = smul.addr %s133, 8
      %s135 = scalar_lea.vmem %s1, %s134
      %p136 = pneg %p60
      %p137 = pneg %p57
      %p138 = pneg %p86
      %p139 = pneg %p83
      %p140 = scmp.lt.s32.totalorder %s13, 1
      %s141 = scalar_select %p140, %s13, 1
      %s142 = scalar_lea.vmem %s2, %s141
      %p143 = scmp.lt.s32.totalorder %s13, 1
      %s144 = scalar_select %p143, %s13, 1
      %s145 = smul.addr %s144, 8
      %s146 = scalar_lea.vmem %s0, %s145
      %p147 = scmp.lt.s32.totalorder %s13, 1
      %s148 = scalar_select %p147, %s13, 1
      %s149 = smul.addr %s148, 8
      %s150 = scalar_lea.vmem %s1, %s149
      %p151 = scmp.lt.s32.totalorder %s13, 1
      %s152 = scalar_select %p151, %s13, 1
      %s153 = scalar_lea.vmem %s2, %s152
      %v154 = vld [vmem:[%s146] sm:$0xff]
      %v155 = vld [vmem:[%s150] sm:$0xff]
      %vm156 = vcmask 261120
      %v157 = vsel %vm156, %v154, -inf
      %158 = vmax.xlane.f32.xlu0 %v157
      %v159 = vpop.xlane.xlu0 %158
      %v160 = vsub.f32 %v154, %v159
      %v161 = vmul.f32 %v160, 1.442695
      %v162 = vpow.pop %v161
      %v163 = vsel %vm156, %v162, 0.0
      %164 = vadd.xlane.f32.xlu0 %v163
      %v165 = vpop.xlane.xlu0 %164
      %v166 = vsel %vm156, %v160, 0.0
      %167 = vadd.xlane.f32.xlu0 %v166
      %v168 = vpop.xlane.xlu0 %167
      %v169 = vlaneseq
      %v170 = vand.u32 %v169, 127
      %171 = vset.pattern.permute.xlu0 0
      %172 = vperm.xlu0 %171, %v155
      %v173 = vpop.permute.xlu0 %172
      %vm174 = vcmp.eq.s32.totalorder %v170, %v173
      %v175 = vsel %vm174, %v160, 0.0
      %v176 = vsel %vm156, %v175, 0.0
      %177 = vadd.xlane.f32.xlu0 %v176
      %v178 = vpop.xlane.xlu0 %177
      %v179 = vlog2.pop %v165
      %v180 = vmul.f32 %v179, 0.6931472
      %v181 = vmul.f32 %v168, 0.0032258064
      %v182 = vsub.f32 %v180, %v181
      %v183 = vmul.f32 %v178, 0.8967742
      %v184 = vsub.f32 %v182, %v183
      %v185 = vrot.slane %v184, 4
      %v186 = vadd.f32 %v184, %v185
      %v187 = vrot.slane %v186, 2
      %v188 = vadd.f32 %v186, %v187
      %v189 = vrot.slane %v188, 1
      %v190 = vadd.f32 %v188, %v189
      %vm191 = vcmask 0
      %192 = vst.msk [vmem:[%s153] sm:$0x1] %vm191, %v190
      %p193 = scmp.lt.s32.totalorder %s13, 1
      %s194 = scalar_select %p193, %s13, 1
      %s195 = scalar_lea.vmem %s2, %s194
      // Predicated region
      $region29: #{tpu_custom_call.1} parent=27 // pred_check
        %p196 = pneg %p83
      $region30: #{tpu_custom_call.1} parent=27 // pred_check_branch
        %198 = sbr.rel (%p196) target = $region32
      $region31: #{tpu_custom_call.1} parent=27 // pred_region
        _
      $region32: #{tpu_custom_call.1} parent=27 // pred_fallthru
        _
    $region28: #{tpu_custom_call.1} parent=5 // pred_fallthru
      _
    %p199 = scmp.le.s32.totalorder 2, %s8
    // Predicated region
    $region33: #{tpu_custom_call.1} parent=5 // pred_check
      %p200 = pneg %p199
    $region34: #{tpu_custom_call.1} parent=5 // pred_check_branch
      %202 = sbr.rel (%p200) target = $region36
    $region35: #{tpu_custom_call.1} parent=5 // pred_region
      %s203 = ssub.s32 %s8, 2
      // Predicated region
      $region37: #{tpu_custom_call.1} parent=35 // pred_check
        %p204 = pneg %p89
      $region38: #{tpu_custom_call.1} parent=35 // pred_check_branch
        %206 = sbr.rel (%p204) target = $region40
      $region39: #{tpu_custom_call.1} parent=35 // pred_region
        %p207 = scmp.lt.s32.totalorder %s14, 1
        %s208 = scalar_select %p207, %s14, 1
        %s209 = scalar_lea.vmem %s2, %s208
      $region40: #{tpu_custom_call.1} parent=35 // pred_fallthru
        _
    $region36: #{tpu_custom_call.1} parent=5 // pred_fallthru
      _
  $region6: #{tpu_custom_call.1} parent=0 // loop_footer
    %s12 = sadd.s32 1, %s8
  $region7: #{tpu_custom_call.1} parent=0 // loop_footer_branch
    %7 = sbr.rel target = $region3
  $region8: #{tpu_custom_call.1} parent=0 // loop_exit
    _

</llo_original>
